<compile_context>
chip_gen: v6e
topology: v6e:2x2x1
jax: 0.10.0
libtpu: 0.0.40
codegen_flags: <defaults>
</compile_context>

<pallas_src>
import functools
import math

import jax
import jax.numpy as jnp
from jax.experimental import pallas as pl
from jax.experimental.pallas import tpu as pltpu


def _round_up(x, m):
    return ((x + m - 1) // m) * m


def _choose_row_tile(n_rows, lane_width, itemsize, max_rows_per_tile, ws_budget):
    """Largest dtype-aligned row tile whose per-step VMEM working set fits the budget,
    capped so the grid keeps >= ~8 steps for pipelining / megacore splitting."""
    sub = max(8, 32 // itemsize)            # 8 rows / f32, 16 / bf16, 32 / int8
    per_row = (
        2 * 2 * lane_width * itemsize       # x in + out blocks, double-buffered
        + 2 * 128 * 4                       # mask block, lane-padded to 128, double-buffered
        + 4 * lane_width * 4                # f32 temporaries: w_eff, b_eff, x cast, product
    )
    tm = (ws_budget // per_row) // sub * sub
    tm = min(tm,
             max(sub, (max_rows_per_tile // sub) * sub),
             _round_up(pl.cdiv(n_rows, 8), sub))   # keep >= ~8 grid steps
    tm = max(sub, tm)
    if tm >= n_rows:
        return n_rows                       # single full-array block (full dims always legal)
    return tm


def _tsa_kernel_fused(x_ref, m_ref, wb_ref, o_ref, *, d_lane, fma_dtype):
    # x_ref: (TM, D_lane), m_ref: (TM, K), wb_ref: (K, 2*D_lane) = [W | B]
    m = m_ref[...].astype(jnp.float32)
    wb = jnp.dot(m, wb_ref[...], preferred_element_type=jnp.float32)
    w_eff = wb[:, :d_lane].astype(fma_dtype)     # 128-aligned static slice
    b_eff = wb[:, d_lane:].astype(fma_dtype)
    o_ref[...] = (x_ref[...].astype(fma_dtype) * w_eff + b_eff).astype(o_ref.dtype)


def _tsa_kernel_split(x_ref, m_ref, w_ref, b_ref, o_ref, *, fma_dtype):
    # Fallback when D_lane is not a multiple of 128 (slice of the fused dot
    # result would cross a lane-tile boundary).
    m = m_ref[...].astype(jnp.float32)
    w_eff = jnp.dot(m, w_ref[...], preferred_element_type=jnp.float32).astype(fma_dtype)
    b_eff = jnp.dot(m, b_ref[...], preferred_element_type=jnp.float32).astype(fma_dtype)
    o_ref[...] = (x_ref[...].astype(fma_dtype) * w_eff + b_eff).astype(o_ref.dtype)


def init_target_speaker_amplifier_params(d_model, non_target_rate=0.01,
                                         dtype=jnp.float32):
    """Deterministic init matching the PyTorch module (diagonal variant).

    Row order: [silence, target, non_target, overlap].
    """
    eye_vals = jnp.array([non_target_rate, 1.0, non_target_rate, 1.0], dtype=dtype)
    class_weights = jnp.tile(eye_vals[:, None], (1, d_model)).astype(dtype)
    class_biases = jnp.zeros((4, d_model), dtype=dtype)
    return class_weights, class_biases


def target_speaker_amplifier(hidden_states, vad_mask, class_weights, class_biases,
                             *, use_silence=True, use_target=True,
                             use_non_target=True, use_overlap=True,
                             max_rows_per_tile=4096,
                             vmem_limit_bytes=32 * 1024 * 1024,
                             low_precision_fma=False,
                             use_pallas=None):
    """Forward pass of TargetSpeakerAmplifier (is_diagonal=True, bias_only=False).

    hidden_states: (B, T, D)
    vad_mask:      (B, 4, T)   [silence, target, non_target, overlap]
    class_weights: (4, D)  diagonal weights per class
    class_biases:  (4, D)  biases per class

    vmem_limit_bytes: scoped VMEM limit; 32 MiB is safe on v5e/v6e/v7x.  On v6e
    (128 MiB physical VMEM) it can be raised to ~64 MiB to allow larger row
    tiles at very large D.
    low_precision_fma: do the elementwise FMA in the input dtype (bf16 VALU on
    v6e/v7x); keep False on v5e and when tight tolerances are required.
    """
    B, T, D = hidden_states.shape
    assert vad_mask.shape == (B, 4, T)
    assert class_weights.shape == (4, D) and class_biases.shape == (4, D)
    dtype = hidden_states.dtype
    itemsize = jnp.dtype(dtype).itemsize

    # Disabled branches are identity in the PyTorch forward: x * m_k == (x*1 + 0) * m_k.
    flags = (use_silence, use_target, use_non_target, use_overlap)
    w4 = jnp.stack([class_weights[k].astype(jnp.float32) if flags[k]
                    else jnp.ones((D,), jnp.float32) for k in range(4)])
    b4 = jnp.stack([class_biases[k].astype(jnp.float32) if flags[k]
                    else jnp.zeros((D,), jnp.float32) for k in range(4)])

    R = B * T
    x2 = hidden_states.reshape(R, D)                         # free (contiguous)
    m2 = jnp.transpose(vad_mask, (0, 2, 1)).reshape(R, 4)    # tiny copy, native dtype

    # Small-input bypass: launch + DMA setup overhead dwarfs the work.
    if use_pallas is None:
        use_pallas = R * D * itemsize >= 256 * 1024
    if not use_pallas:
        m2f = m2.astype(jnp.float32)
        out = x2.astype(jnp.float32) * (m2f @ w4) + (m2f @ b4)
        return out.astype(dtype).reshape(B, T, D)

    # Lane-dense folding: pack g consecutive rows into the 128-wide lane axis
    # when D < 128.  g must divide R exactly so the reshape is a free bitcast.
    g = 1
    if D < 128 and 128 % D == 0:
        g0 = 128 // D
        g = g0 if R % g0 == 0 else math.gcd(g0, R)
    Rf = R // g
    D_lane = g * D
    K = 4 * g

    xf = x2.reshape(Rf, D_lane)                               # free (contiguous)
    if g > 1:
        mf = m2.reshape(Rf, g, 4).transpose(0, 2, 1).reshape(Rf, K)   # tiny copy
        # Block-diagonal parameter matrices: w_mat[c*g+j, j*D+d] = w4[c, d].
        eye_g = jnp.eye(g, dtype=jnp.float32)
        w_mat = jnp.einsum("jk,cd->cjkd", eye_g, w4).reshape(K, D_lane)
        b_mat = jnp.einsum("jk,cd->cjkd", eye_g, b4).reshape(K, D_lane)
    else:
        mf = m2
        w_mat, b_mat = w4, b4

    # Row tiling: cdiv grid, partial final block handled (masked) by Pallas.
    ws_budget = max(4 * 1024 * 1024, int(vmem_limit_bytes * 0.625))
    tm = _choose_row_tile(Rf, D_lane, itemsize, max_rows_per_tile, ws_budget)
    grid = (pl.cdiv(Rf, tm),)

    fma_dtype = dtype if (low_precision_fma and dtype != jnp.float32) else jnp.float32
    fused = (D_lane % 128 == 0)

    x_spec = pl.BlockSpec((tm, D_lane), lambda i: (i, 0))
    m_spec = pl.BlockSpec((tm, K), lambda i: (i, 0))
    o_spec = pl.BlockSpec((tm, D_lane), lambda i: (i, 0))

    mask_isz = jnp.dtype(mf.dtype).itemsize
    cost = pl.CostEstimate(
        flops=int(Rf) * (2 * K * 2 * D_lane + 2 * D_lane),
        transcendentals=0,
        bytes_accessed=int(Rf) * D_lane * 2 * itemsize
        + int(Rf) * K * mask_isz + 2 * K * D_lane * 4,
    )

    compiler_params = pltpu.CompilerParams(
        dimension_semantics=("parallel",),   # lets v7x split rows across its 2 TCs
        vmem_limit_bytes=vmem_limit_bytes,
    )

    if fused:
        wb_mat = jnp.concatenate([w_mat, b_mat], axis=1)      # (K, 2*D_lane)
        kernel = functools.partial(_tsa_kernel_fused, d_lane=D_lane, fma_dtype=fma_dtype)
        in_specs = [x_spec, m_spec,
                    pl.BlockSpec((K, 2 * D_lane), lambda i: (0, 0))]
        operands = (xf, mf, wb_mat)
    else:
        kernel = functools.partial(_tsa_kernel_split, fma_dtype=fma_dtype)
        p_spec = pl.BlockSpec((K, D_lane), lambda i: (0, 0))
        in_specs = [x_spec, m_spec, p_spec, p_spec]
        operands = (xf, mf, w_mat, b_mat)

    out = pl.pallas_call(
        kernel,
        out_shape=jax.ShapeDtypeStruct((Rf, D_lane), dtype),
        grid_spec=pltpu.PrefetchScalarGridSpec(
            num_scalar_prefetch=0,
            grid=grid,
            in_specs=in_specs,
            out_specs=o_spec,
        ),
        compiler_params=compiler_params,
        cost_estimate=cost,
    )(*operands)

    # (Rf, g*D) -> (R, D) -> (B, T, D): free reshapes of a contiguous buffer.
    return out.reshape(R, D).reshape(B, T, D)


def _reference_forward(hidden_states, vad_mask, class_weights, class_biases):
    """Plain-JAX reference with the exact PyTorch summation order."""
    out = 0.0
    for k in range(4):
        branch = hidden_states * class_weights[k] + class_biases[k]
        out = out + branch * vad_mask[:, k, :, None]
    return out


if __name__ == "__main__":
    key = jax.random.PRNGKey(0)
    k1, k2, k3, k4, k5, k6 = jax.random.split(key, 6)

    # --- Test 1: module-sized demo (d_model=32 -> lane-dense fold g=4) ---------
    d_model, batch, seq = 32, 2, 8
    hidden = jax.random.normal(k1, (batch, seq, d_model), dtype=jnp.float32)
    vad = jax.random.uniform(k2, (batch, 4, seq), dtype=jnp.float32)
    cw, cb = init_target_speaker_amplifier_params(d_model, non_target_rate=0.01)

    out = target_speaker_amplifier(hidden, vad, cw, cb, use_pallas=True)
    out = jax.block_until_ready(out)
    ref = _reference_forward(hidden, vad, cw, cb)
    assert out.shape == hidden.shape and out.dtype == hidden.dtype
    assert jnp.allclose(out, ref, atol=1e-5, rtol=1e-5)

    # --- Test 2: larger shape exercising multi-step grid + partial final block -
    d_model2, batch2, seq2 = 256, 2, 201
    hidden2 = jax.random.normal(k3, (batch2, seq2, d_model2), dtype=jnp.float32)
    vad2 = jax.random.uniform(k4, (batch2, 4, seq2), dtype=jnp.float32)
    cw2, cb2 = init_target_speaker_amplifier_params(d_model2, non_target_rate=0.01)
    cw2 = cw2 + 0.05 * jax.random.normal(k5, (4, d_model2), dtype=jnp.float32)
    cb2 = 0.10 * jax.random.normal(k6, (4, d_model2), dtype=jnp.float32)

    out2 = target_speaker_amplifier(hidden2, vad2, cw2, cb2, max_rows_per_tile=128)
    out2 = jax.block_until_ready(out2)
    ref2 = _reference_forward(hidden2, vad2, cw2, cb2)
    assert out2.shape == hidden2.shape and out2.dtype == hidden2.dtype
    assert jnp.allclose(out2, ref2, atol=1e-5, rtol=1e-5)

    print("KERNEL_OK")
</pallas_src>

<mosaic_0001>
module attributes {stable_mosaic.version = 11 : i64} {
  func.func @_tsa_kernel_fused(%arg0: i32, %arg1: memref<4x128xf32, #tpu.memory_space<vmem>>, %arg2: memref<4x16xf32, #tpu.memory_space<vmem>>, %arg3: memref<16x256xf32, #tpu.memory_space<vmem>>, %arg4: memref<4x128xf32, #tpu.memory_space<vmem>>) attributes {dimension_semantics = [#tpu.dimension_semantics<parallel>], iteration_bounds = array<i64: 1>, scalar_prefetch = 0 : i64, scratch_operands = 0 : i64, tpu.core_type = #tpu.core_type<tc>, window_params = [{transform_indices = @transform_0, window_bounds = array<i64: 4, 128>}, {transform_indices = @transform_1, window_bounds = array<i64: 4, 16>}, {pipeline_mode = #tpu.pipeline_mode<synchronous>, transform_indices = @transform_2, window_bounds = array<i64: 16, 256>}, {transform_indices = @transform_3, window_bounds = array<i64: 4, 128>}]} {
    %c0 = arith.constant 0 : index
    %c0_0 = arith.constant 0 : index
    %0 = vector.load %arg2[%c0, %c0_0] : memref<4x16xf32, #tpu.memory_space<vmem>>, vector<4x16xf32>
    %c0_1 = arith.constant 0 : index
    %c0_2 = arith.constant 0 : index
    %1 = vector.load %arg3[%c0_1, %c0_2] : memref<16x256xf32, #tpu.memory_space<vmem>>, vector<16x256xf32>
    %cst = arith.constant dense<0.000000e+00> : vector<4x256xf32>
    %2 = tpu.matmul %0, %1, %cst {dimension_numbers = #tpu.dot_dimension_numbers<[1], [0], [0], [1], [0, 0, 1, 1], [], []>} : vector<4x16xf32>, vector<16x256xf32>, vector<4x256xf32> -> vector<4x256xf32>
    %3 = vector.extract_strided_slice %2 {offsets = [0, 0], sizes = [4, 128], strides = [1, 1]} : vector<4x256xf32> to vector<4x128xf32>
    %4 = vector.extract_strided_slice %2 {offsets = [0, 128], sizes = [4, 128], strides = [1, 1]} : vector<4x256xf32> to vector<4x128xf32>
    %c0_3 = arith.constant 0 : index
    %c0_4 = arith.constant 0 : index
    %5 = vector.load %arg1[%c0_3, %c0_4] : memref<4x128xf32, #tpu.memory_space<vmem>>, vector<4x128xf32>
    %6 = arith.mulf %5, %3 : vector<4x128xf32>
    %7 = arith.addf %6, %4 : vector<4x128xf32>
    %c0_5 = arith.constant 0 : index
    %c0_6 = arith.constant 0 : index
    %8 = vector.load %arg4[%c0_5, %c0_6] : memref<4x128xf32, #tpu.memory_space<vmem>>, vector<4x128xf32>
    tpu.vector_store %arg4[%c0_5, %c0_6], %7 {strides = array<i32>} : memref<4x128xf32, #tpu.memory_space<vmem>>, vector<4x128xf32>,
    return
  }
  func.func @transform_0(%arg0: i32) -> (i32, i32) {
    %c0_i32 = arith.constant 0 : i32
    %c0_i32_0 = arith.constant 0 : i32
    return %arg0, %c0_i32 : i32, i32
  }
  func.func @transform_1(%arg0: i32) -> (i32, i32) {
    %c0_i32 = arith.constant 0 : i32
    %c0_i32_0 = arith.constant 0 : i32
    return %arg0, %c0_i32 : i32, i32
  }
  func.func @transform_2(%arg0: i32) -> (i32, i32) {
    %c0_i32 = arith.constant 0 : i32
    %c0_i32_0 = arith.constant 0 : i32
    %c0_i32_1 = arith.constant 0 : i32
    return %c0_i32, %c0_i32_0 : i32, i32
  }
  func.func @transform_3(%arg0: i32) -> (i32, i32) {
    %c0_i32 = arith.constant 0 : i32
    %c0_i32_0 = arith.constant 0 : i32
    return %arg0, %c0_i32 : i32, i32
  }
}

</mosaic_0001>

<llo_original>
// kernel: tpu_custom_call.1
$region0: #{tpu_custom_call.1}
  #allocation0 [shape = 'u32[]', space=smem, size = 0x4, offset = 0x4, fixed_abs, tag = 'smem constant byte address 0x4 - core index']
  #allocation1 [shape = 'u32[144,128]{1,0:T(1,128)}', space=vmem, size = 0x12000, scoped, tag = 'internal scratch']
  %s0 = inlined_call_operand.hbm [shape: f32[4,128], index: 0, kind: input, shape index: {}]
  %s1 = inlined_call_operand.hbm [shape: f32[4,16], index: 1, kind: input, shape index: {}]
  %s2 = inlined_call_operand.hbm [shape: f32[16,256], index: 2, kind: input, shape index: {}]
  %s3 = inlined_call_operand.hbm [shape: f32[4,128], index: 3, kind: output, shape index: {}]
  %s4 = sld [smem:[#allocation0]]
  $region34: #{tpu_custom_call.1} parent=0
    _
  %s6 = ssub.s32 1, %s4
  %s7 = scalar_select 0, %s6, %s4
  $region1: #{tpu_custom_call.1} parent=0
    #allocation2 [shape = 'u8[2048]{0}', space=vmem, size = 0x800, scoped, tag = 'input window, operand 0, single buffered']
    #allocation3 [shape = 's32[1]{0}', space=sflag, size = 0x4, scoped, tag = 'scoped memory for tpu_custom_call.1']
    #allocation4 [shape = 's32[1]{0}', space=sflag, size = 0x4, scoped, tag = 'scoped memory for tpu_custom_call.1']
    #allocation5 [shape = 'u8[2048]{0}', space=vmem, size = 0x800, scoped, tag = 'input window, operand 1, single buffered']
    #allocation6 [shape = 's32[1]{0}', space=sflag, size = 0x4, scoped, tag = 'scoped memory for tpu_custom_call.1']
    #allocation7 [shape = 'u8[16384]{0}', space=vmem, size = 0x4000, scoped, tag = 'input window, operand 2, single buffered']
    #allocation8 [shape = 'u8[2048]{0}', space=vmem, size = 0x800, scoped, tag = 'output window, operand 0, single buffered']
    %8 = vsyncpa [#allocation3], 0
    %9 = vsyncpa [#allocation6], 0
    %10 = vsyncpa [#allocation4], 0
    // Predicated region
    $region2: #{tpu_custom_call.1} parent=1 // pred_check
      _
    $region3: #{tpu_custom_call.1} parent=1 // pred_check_branch
      %12 = sbr.rel (0) target = $region5
    $region4: #{tpu_custom_call.1} parent=1 // pred_region
      %s14 = ssub.s32 64, 64
      %15 = vsyncadd [#allocation3], %s14
      %s17 = sshll.u32 [#allocation2], 4
      %s18 = int_to_ptr.vmem [resolvable:$true] %s17
      %20 = dma.hbm_to_vmem [thread:$0]  %s0, 64, %s18, [#allocation3]
    $region5: #{tpu_custom_call.1} parent=1 // pred_fallthru
      _
    // Predicated region
    $region6: #{tpu_custom_call.1} parent=1 // pred_check
      _
    $region7: #{tpu_custom_call.1} parent=1 // pred_check_branch
      %22 = sbr.rel (0) target = $region9
    $region8: #{tpu_custom_call.1} parent=1 // pred_region
      %s24 = ssub.s32 64, 64
      %25 = vsyncadd [#allocation6], %s24
      %s27 = sshll.u32 [#allocation5], 4
      %s28 = int_to_ptr.vmem [resolvable:$true] %s27
      %30 = dma.hbm_to_vmem [thread:$0]  %s1, 64, %s28, [#allocation6]
    $region9: #{tpu_custom_call.1} parent=1 // pred_fallthru
      _
    // Predicated region
    $region10: #{tpu_custom_call.1} parent=1 // pred_check
      _
    $region11: #{tpu_custom_call.1} parent=1 // pred_check_branch
      %32 = sbr.rel (0) target = $region13
    $region12: #{tpu_custom_call.1} parent=1 // pred_region
      %s34 = ssub.s32 512, 512
      %35 = vsyncadd [#allocation6], %s34
      %s36 = sshll.u32 [#allocation7], 4
      %s37 = int_to_ptr.vmem [resolvable:$true] %s36
      %42 = dma.hbm_to_vmem [thread:$0]  %s2, 512, %s37, [#allocation6], 256, 256, 16
    $region13: #{tpu_custom_call.1} parent=1 // pred_fallthru
      _
    // Predicated region
    $region14: #{tpu_custom_call.1} parent=1 // pred_check
      _
    $region15: #{tpu_custom_call.1} parent=1 // pred_check_branch
      %44 = sbr.rel (0) target = $region17
    $region16: #{tpu_custom_call.1} parent=1 // pred_region
      %45 = dma.done [#allocation3], 64
    $region17: #{tpu_custom_call.1} parent=1 // pred_fallthru
      _
    // Predicated region
    $region18: #{tpu_custom_call.1} parent=1 // pred_check
      _
    $region19: #{tpu_custom_call.1} parent=1 // pred_check_branch
      %47 = sbr.rel (0) target = $region21
    $region20: #{tpu_custom_call.1} parent=1 // pred_region
      %48 = dma.done [#allocation6], 64
    $region21: #{tpu_custom_call.1} parent=1 // pred_fallthru
      _
    // Predicated region
    $region22: #{tpu_custom_call.1} parent=1 // pred_check
      _
    $region23: #{tpu_custom_call.1} parent=1 // pred_check_branch
      %50 = sbr.rel (0) target = $region25
    $region24: #{tpu_custom_call.1} parent=1 // pred_region
      %51 = dma.done [#allocation6], 512
    $region25: #{tpu_custom_call.1} parent=1 // pred_fallthru
      _
    %v52 = vld [vmem:[#allocation5] sm:$0xf]
    %v53 = vld [vmem:[#allocation7] sm:$0xff]
    %v54 = vld [vmem:[#allocation7 + $0x8] sm:$0xff]
    %v55 = vld [vmem:[#allocation7 + $0x10] sm:$0xff]
    %v56 = vld [vmem:[#allocation7 + $0x18] sm:$0xff]
    %vm57 = vcmask 130048
    %v59 = vsel %vm57, %v52, 0
    %61 = vmatprep.subr.mxu0 0.0
    %62 = vmatpush1.msra.mxu0 0.0
    %63 = vmatprep.subr.mxu0 0.0
    %64 = vmatpush1.msra.mxu0 0.0
    %65 = vmatprep.subr.mxu0 0.0
    %66 = vmatpush1.msra.mxu0 0.0
    %67 = vmatprep.subr.mxu0 0.0
    %68 = vmatpush1.msra.mxu0 0.0
    %69 = vmatprep.subr.mxu0 0.0
    %70 = vmatpush1.msra.mxu0 0.0
    %71 = vmatprep.subr.mxu0 0.0
    %72 = vmatpush1.msra.mxu0 0.0
    %73 = vmatprep.subr.mxu0 0.0
    %74 = vmatpush1.msra.mxu0 0.0
    %75 = vmatprep.subr.mxu0 0.0
    %76 = vmatpush1.msra.mxu0 0.0
    %77 = vmatprep.subr.mxu0 0.0
    %78 = vmatpush1.msra.mxu0 0.0
    %79 = vmatprep.subr.mxu0 0.0
    %80 = vmatpush1.msra.mxu0 0.0
    %81 = vmatprep.subr.mxu0 0.0
    %82 = vmatpush1.msra.mxu0 0.0
    %83 = vmatprep.subr.mxu0 0.0
    %84 = vmatpush1.msra.mxu0 0.0
    %85 = vmatprep.subr.mxu0 0.0
    %86 = vmatpush1.msra.mxu0 0.0
    %87 = vmatprep.subr.mxu0 0.0
    %88 = vmatpush1.msra.mxu0 0.0
    %89 = vmatprep.subr.mxu0 %v56
    %90 = vmatpush1.msra.mxu0 %v55
    %91 = vmatprep.subr.mxu0 %v54
    %92 = vmatpush1.msra.mxu0 %v53
    %93 = vmatprep.subr.mxu0 0.0
    %94 = vmatpush2.msra.mxu0 0.0
    %95 = vmatprep.subr.mxu0 0.0
    %96 = vmatpush2.msra.mxu0 0.0
    %97 = vmatprep.subr.mxu0 0.0
    %98 = vmatpush2.msra.mxu0 0.0
    %99 = vmatprep.subr.mxu0 0.0
    %100 = vmatpush2.msra.mxu0 0.0
    %101 = vmatprep.subr.mxu0 0.0
    %102 = vmatpush2.msra.mxu0 0.0
    %103 = vmatprep.subr.mxu0 0.0
    %104 = vmatpush2.msra.mxu0 0.0
    %105 = vmatprep.subr.mxu0 0.0
    %106 = vmatpush2.msra.mxu0 0.0
    %107 = vmatprep.subr.mxu0 0.0
    %108 = vmatpush2.msra.mxu0 0.0
    %109 = vmatprep.subr.mxu0 0.0
    %110 = vmatpush2.msra.mxu0 0.0
    %111 = vmatprep.subr.mxu0 0.0
    %112 = vmatpush2.msra.mxu0 0.0
    %113 = vmatprep.subr.mxu0 0.0
    %114 = vmatpush2.msra.mxu0 0.0
    %115 = vmatprep.subr.mxu0 0.0
    %116 = vmatpush2.msra.mxu0 0.0
    %117 = vmatprep.subr.mxu0 0.0
    %118 = vmatpush2.msra.mxu0 0.0
    %119 = vmatprep.subr.mxu0 0.0
    %120 = vmatpush2.msra.mxu0 0.0
    %121 = vmatprep.subr.mxu0 0.0
    %122 = vmatpush2.msra.mxu0 0.0
    %123 = vmatprep.subr.mxu0 0.0
    %124 = vmatpush2.msra.mxu0 0.0
    %125 = vmatprep.mubr.f32.mxu0 0.0
    %126 = vmatmul.mubr.f32.gmra.mxu0 %v59
    %v127 = vpop.f32.mrf.mxu0
    %v128 = vadd.f32 0.0, %v127
    %v129 = vpop.f32.mrf.mxu0
    %v130 = vadd.f32 0.0, %v129
    %131 = vdwg.mxu0
    %v132 = vld [vmem:[#allocation2] sm:$0xf]
    %v133 = vmul.f32 %v132, %v128
    %v134 = vadd.f32 %v133, %v130
    %135 = vst [vmem:[#allocation8] sm:$0xf] %v134
    // Predicated region
    $region26: #{tpu_custom_call.1} parent=1 // pred_check
      _
    $region27: #{tpu_custom_call.1} parent=1 // pred_check_branch
      %137 = sbr.rel (0) target = $region29
    $region28: #{tpu_custom_call.1} parent=1 // pred_region
      %s139 = ssub.s32 64, 64
      %140 = vsyncadd [#allocation4], %s139
      %s142 = sshll.u32 [#allocation8], 4
      %s143 = int_to_ptr.vmem [resolvable:$true] %s142
      %145 = dma.vmem_to_hbm [thread:$0]  %s143, 64, %s3, [#allocation4]
    $region29: #{tpu_custom_call.1} parent=1 // pred_fallthru
      _
    // Predicated region
    $region30: #{tpu_custom_call.1} parent=1 // pred_check
      _
    $region31: #{tpu_custom_call.1} parent=1 // pred_check_branch
      %147 = sbr.rel (0) target = $region33
    $region32: #{tpu_custom_call.1} parent=1 // pred_region
      %148 = dma.done [#allocation4], 64
    $region33: #{tpu_custom_call.1} parent=1 // pred_fallthru
      _
    %149 = vsyncpa [#allocation3], 1
    %150 = vsyncpa [#allocation6], 1
    %151 = vsyncpa [#allocation4], 1

</llo_original>
